<compile_context>
chip_gen: v7x
topology: tpu7x:2x2x1
jax: 0.10.0
libtpu: 0.0.40
codegen_flags: <defaults>
</compile_context>

<pallas_src>
import math

import jax
import jax.numpy as jnp
from jax.experimental import pallas as pl
from jax.experimental.pallas import tpu as pltpu

_VMEM_LIMIT = 32 * 1024 * 1024   # scoped VMEM; safe on v5e/v6e (128 MiB) and v7x (64 MiB)
_MAX_T_TILE = 512                # output time rows per grid step


def _pick_t_tile(L):
    """Largest multiple-of-8 divisor of L that is <= _MAX_T_TILE (or L itself)."""
    if L <= _MAX_T_TILE:
        return L
    for cand in range(_MAX_T_TILE, 7, -8):
        if L % cand == 0:
            return cand
    return L


def _snake(x, a):
    # Snake1d: x + (a + 1e-9)^-1 * sin(a*x)^2 ; fp32, a broadcast over rows.
    return x + jnp.square(jnp.sin(a * x)) * (1.0 / (a + 1e-9))


# ----------------------------------------------------------------------------
# Kernel builders
# ----------------------------------------------------------------------------
def _make_conv_kernel(K, dilation, T_tile, has_snake):
    """Fused (optional Snake1d) + K-tap dilated conv for one output time tile."""
    W = T_tile + (K - 1) * dilation      # haloed input rows needed per tile

    def kernel(x_ref, w_ref, b_ref, a_ref, o_ref):
        t = pl.program_id(1)
        row0 = pl.multiple_of(t * T_tile, T_tile)
        xw = x_ref[pl.ds(row0, W), :]                       # (W, Cin) window
        if has_snake:
            xw = _snake(xw.astype(jnp.float32), a_ref[...].astype(jnp.float32))
        xw = xw.astype(jnp.bfloat16)                        # MXU operand dtype
        if K == 1:
            taps = xw
        else:
            taps = jnp.concatenate(
                [xw[k * dilation:k * dilation + T_tile, :] for k in range(K)],
                axis=-1)                                    # (T_tile, K*Cin)
        y = jnp.dot(taps, w_ref[...], preferred_element_type=jnp.float32)
        o_ref[...] = (y + b_ref[...]).astype(o_ref.dtype)

    return kernel


def _make_resunit_kernel(T_tile, dilation):
    """Fused ResidualUnit: Snake -> dilated 7-tap conv -> Snake -> 1x1 conv -> +x."""
    K = 7
    pad = (K - 1) * dilation // 2        # 3 * dilation ('same' conv)
    W = T_tile + (K - 1) * dilation

    def kernel(x_ref, w1_ref, b1_ref, a1_ref, w2_ref, b2_ref, a2_ref, o_ref):
        t = pl.program_id(1)
        row0 = pl.multiple_of(t * T_tile, T_tile)
        xw = x_ref[pl.ds(row0, W), :].astype(jnp.float32)   # zero-padded halo window
        h = _snake(xw, a1_ref[...].astype(jnp.float32)).astype(jnp.bfloat16)
        taps = jnp.concatenate(
            [h[k * dilation:k * dilation + T_tile, :] for k in range(K)],
            axis=-1)                                        # (T_tile, 7*C)
        y = jnp.dot(taps, w1_ref[...], preferred_element_type=jnp.float32)
        y = y + b1_ref[...]
        y = _snake(y, a2_ref[...].astype(jnp.float32))
        y = jnp.dot(y.astype(jnp.bfloat16), w2_ref[...],
                    preferred_element_type=jnp.float32)
        y = y + b2_ref[...]
        # residual add: centre of the haloed window == original x tile.
        # (x.shape[-2] - y.shape[-2]) // 2 == 0 for 'same' convs -> no trim.
        o_ref[...] = (xw[pad:pad + T_tile, :] + y).astype(o_ref.dtype)

    return kernel


# ----------------------------------------------------------------------------
# pallas_call wrappers
# ----------------------------------------------------------------------------
def fused_snake_conv(x, w, b, alpha, *, stride=1, dilation=1, padding=0):
    """(optional Snake1d) + WNConv1d as a single pallas_call.

    x: (B, L, Cin) fp32; w: (K, Cin, Cout) fp32; b: (Cout,); alpha: (Cin,)|None.
    """
    B, L, Cin = x.shape
    K, _, Cout = w.shape
    L_out = (L + 2 * padding - dilation * (K - 1) - 1) // stride + 1

    if stride > 1:
        # rewrite as a unit-stride 2-tap conv via space-to-depth
        assert dilation == 1 and K % stride == 0
        xp = jnp.pad(x, ((0, 0), (padding, padding), (0, 0)))
        extra = (-xp.shape[1]) % stride
        if extra:
            xp = jnp.pad(xp, ((0, 0), (0, extra), (0, 0)))
        x = xp.reshape(B, xp.shape[1] // stride, stride * Cin)
        w = w.reshape(K // stride, stride * Cin, Cout)
        if alpha is not None:
            alpha = jnp.tile(alpha, stride)
        K, Cin = K // stride, stride * Cin
    elif padding > 0:
        # zero pad commutes with Snake (snake(0) == 0); one pad per fused call
        x = jnp.pad(x, ((0, 0), (padding, padding), (0, 0)))

    has_snake = alpha is not None
    if alpha is None:
        alpha = jnp.zeros((Cin,), jnp.float32)   # dummy ref, never read

    L_in = x.shape[1]
    T_tile = _pick_t_tile(L_out)
    NT = L_out // T_tile
    wf = w.reshape(K * Cin, Cout).astype(jnp.bfloat16)

    kernel = _make_conv_kernel(K, dilation, T_tile, has_snake)
    return pl.pallas_call(
        kernel,
        out_shape=jax.ShapeDtypeStruct((B, L_out, Cout), x.dtype),
        grid=(B, NT),
        in_specs=[
            # haloed input stays resident across the time-tile axis.
            # TODO(synk): for very long audio, stream time tiles via manual
            # halo DMA (memory_space=pl.ANY) so VMEM stays bounded.
            pl.BlockSpec((None, L_in, Cin), lambda i, j: (i, 0, 0)),
            pl.BlockSpec((K * Cin, Cout), lambda i, j: (0, 0)),
            pl.BlockSpec((1, Cout), lambda i, j: (0, 0)),
            pl.BlockSpec((1, Cin), lambda i, j: (0, 0)),
        ],
        # TODO(synk): lane-pack Cout < 128 outputs (fold time into lanes) for
        # full-width vst on the small early-layer channel counts.
        out_specs=pl.BlockSpec((None, T_tile, Cout), lambda i, j: (i, j, 0)),
        compiler_params=pltpu.CompilerParams(
            dimension_semantics=("parallel", "parallel"),
            vmem_limit_bytes=_VMEM_LIMIT),
    )(x, wf, b.reshape(1, Cout), alpha.reshape(1, Cin))


def fused_residual_unit(x, p, dilation):
    """Whole ResidualUnit as one pallas_call (intermediates stay in VMEM)."""
    B, T, C = x.shape
    K = 7
    pad = (K - 1) * dilation // 2
    T_tile = _pick_t_tile(T)
    NT = T // T_tile
    Lp = T + 2 * pad

    w1, b1 = p["w1b1"]
    w2, b2 = p["w2b2"]
    w1f = w1.reshape(K * C, C).astype(jnp.bfloat16)
    w2f = w2.reshape(C, C).astype(jnp.bfloat16)
    xp = jnp.pad(x, ((0, 0), (pad, pad), (0, 0)))   # halo for the 'same' conv

    kernel = _make_resunit_kernel(T_tile, dilation)
    return pl.pallas_call(
        kernel,
        out_shape=jax.ShapeDtypeStruct((B, T, C), x.dtype),
        grid=(B, NT),
        in_specs=[
            pl.BlockSpec((None, Lp, C), lambda i, j: (i, 0, 0)),
            pl.BlockSpec((K * C, C), lambda i, j: (0, 0)),
            pl.BlockSpec((1, C), lambda i, j: (0, 0)),
            pl.BlockSpec((1, C), lambda i, j: (0, 0)),
            pl.BlockSpec((C, C), lambda i, j: (0, 0)),
            pl.BlockSpec((1, C), lambda i, j: (0, 0)),
            pl.BlockSpec((1, C), lambda i, j: (0, 0)),
        ],
        out_specs=pl.BlockSpec((None, T_tile, C), lambda i, j: (i, j, 0)),
        compiler_params=pltpu.CompilerParams(
            dimension_semantics=("parallel", "parallel"),
            vmem_limit_bytes=_VMEM_LIMIT),
    )(xp, w1f, b1.reshape(1, C), p["a1"].reshape(1, C),
      w2f, b2.reshape(1, C), p["a2"].reshape(1, C))


# ----------------------------------------------------------------------------
# Module-level forward passes
# ----------------------------------------------------------------------------
def encoder_block(x, p):
    for dil, rp in zip((1, 3, 9), p["res"]):
        x = fused_residual_unit(x, rp, dil)
    w, b = p["wb"]
    s = p["stride"]
    return fused_snake_conv(x, w, b, p["a"], stride=s, padding=math.ceil(s / 2))


def encoder_forward(x, params):
    w0, b0 = params["conv0"]
    x = fused_snake_conv(x, w0, b0, None, padding=3)      # first conv: no Snake
    for bp in params["blocks"]:
        x = encoder_block(x, bp)
    wf, bf = params["final"]
    return fused_snake_conv(x, wf, bf, params["final_a"], padding=1)


# ----------------------------------------------------------------------------
# Deterministic synthetic parameter init
# ----------------------------------------------------------------------------
def init_conv(key, K, Cin, Cout):
    kw, kb = jax.random.split(key)
    w = jax.random.normal(kw, (K, Cin, Cout), jnp.float32) / math.sqrt(K * Cin)
    b = jax.random.normal(kb, (Cout,), jnp.float32) * 0.01
    return w, b


def init_encoder(key, d_model, strides, d_latent):
    keys = iter(jax.random.split(key, 128))
    params = {"conv0": init_conv(next(keys), 7, 1, d_model)}
    dm = d_model
    blocks = []
    for s in strides:
        dm *= 2
        din = dm // 2
        res = []
        for _dil in (1, 3, 9):
            res.append({
                "a1": jnp.ones((din,), jnp.float32),     # Snake alpha init = 1
                "w1b1": init_conv(next(keys), 7, din, din),
                "a2": jnp.ones((din,), jnp.float32),
                "w2b2": init_conv(next(keys), 1, din, din),
            })
        blocks.append({
            "res": res,
            "a": jnp.ones((din,), jnp.float32),
            "wb": init_conv(next(keys), 2 * s, din, dm),
            "stride": s,
        })
    params["blocks"] = blocks
    params["final_a"] = jnp.ones((dm,), jnp.float32)
    params["final"] = init_conv(next(keys), 3, dm, d_latent)
    return params


# ----------------------------------------------------------------------------
if __name__ == "__main__":
    # Small config consistent with the module: Encoder(d_model=16, [2, 4], 8)
    d_model, strides, d_latent = 16, [2, 4], 8
    B, T = 2, 64

    key = jax.random.PRNGKey(0)
    k_param, k_in = jax.random.split(key)
    params = init_encoder(k_param, d_model, strides, d_latent)

    # PyTorch-convention input (B, C=1, T); transpose to (B, T, C) layout.
    x_nct = jax.random.normal(k_in, (B, 1, T), jnp.float32)
    x = jnp.transpose(x_nct, (0, 2, 1))

    y = encoder_forward(x, params)
    y = jax.block_until_ready(y)

    y_nct = jnp.transpose(y, (0, 2, 1))   # back to PyTorch (B, C, T)
    expected_T = T // math.prod(strides)
    assert y_nct.shape == (B, d_latent, expected_T), y_nct.shape
    assert bool(jnp.all(jnp.isfinite(y_nct)))
    print("KERNEL_OK")
</pallas_src>

<mosaic_0001>
module attributes {stable_mosaic.version = 11 : i64} {
  func.func @kernel(%arg0: i32, %arg1: i32, %arg2: memref<1x70x1xf32, #tpu.memory_space<vmem>>, %arg3: memref<7x16xbf16, #tpu.memory_space<vmem>>, %arg4: memref<1x16xf32, #tpu.memory_space<vmem>>, %arg5: memref<1x1xf32, #tpu.memory_space<vmem>>, %arg6: memref<1x64x16xf32, #tpu.memory_space<vmem>>) attributes {dimension_semantics = [#tpu.dimension_semantics<parallel>, #tpu.dimension_semantics<parallel>], iteration_bounds = array<i64: 2, 1>, scalar_prefetch = 0 : i64, scratch_operands = 0 : i64, tpu.core_type = #tpu.core_type<tc>, window_params = [{transform_indices = @transform_0, window_bounds = array<i64: 1, 70, 1>}, {pipeline_mode = #tpu.pipeline_mode<synchronous>, transform_indices = @transform_1, window_bounds = array<i64: 7, 16>}, {pipeline_mode = #tpu.pipeline_mode<synchronous>, transform_indices = @transform_2, window_bounds = array<i64: 1, 16>}, {pipeline_mode = #tpu.pipeline_mode<synchronous>, transform_indices = @transform_3, window_bounds = array<i64: 1, 1>}, {transform_indices = @transform_4, window_bounds = array<i64: 1, 64, 16>}]} {
    %c64_i32 = arith.constant 64 : i32
    %0 = arith.muli %arg1, %c64_i32 : i32
    %1 = tpu.assume_multiple %0, 64 : i32
    %c0 = arith.constant 0 : index
    %2 = arith.index_cast %1 : i32 to index
    %c0_0 = arith.constant 0 : index
    %3 = vector.load %arg2[%c0, %2, %c0_0] : memref<1x70x1xf32, #tpu.memory_space<vmem>>, vector<1x70x1xf32>
    %4 = vector.shape_cast %3 : vector<1x70x1xf32> to vector<70x1xf32>
    %5 = arith.truncf %4 : vector<70x1xf32> to vector<70x1xbf16>
    %6 = vector.extract_strided_slice %5 {offsets = [0, 0], sizes = [64, 1], strides = [1, 1]} : vector<70x1xbf16> to vector<64x1xbf16>
    %7 = vector.extract_strided_slice %5 {offsets = [1, 0], sizes = [64, 1], strides = [1, 1]} : vector<70x1xbf16> to vector<64x1xbf16>
    %8 = vector.extract_strided_slice %5 {offsets = [2, 0], sizes = [64, 1], strides = [1, 1]} : vector<70x1xbf16> to vector<64x1xbf16>
    %9 = vector.extract_strided_slice %5 {offsets = [3, 0], sizes = [64, 1], strides = [1, 1]} : vector<70x1xbf16> to vector<64x1xbf16>
    %10 = vector.extract_strided_slice %5 {offsets = [4, 0], sizes = [64, 1], strides = [1, 1]} : vector<70x1xbf16> to vector<64x1xbf16>
    %11 = vector.extract_strided_slice %5 {offsets = [5, 0], sizes = [64, 1], strides = [1, 1]} : vector<70x1xbf16> to vector<64x1xbf16>
    %12 = vector.extract_strided_slice %5 {offsets = [6, 0], sizes = [64, 1], strides = [1, 1]} : vector<70x1xbf16> to vector<64x1xbf16>
    %13 = tpu.concatenate %6, %7, %8, %9, %10, %11, %12 in 1 : vector<64x1xbf16>, vector<64x1xbf16>, vector<64x1xbf16>, vector<64x1xbf16>, vector<64x1xbf16>, vector<64x1xbf16>, vector<64x1xbf16> -> vector<64x7xbf16>
    %c0_1 = arith.constant 0 : index
    %c0_2 = arith.constant 0 : index
    %14 = vector.load %arg3[%c0_1, %c0_2] : memref<7x16xbf16, #tpu.memory_space<vmem>>, vector<7x16xbf16>
    %cst = arith.constant dense<0.000000e+00> : vector<64x16xf32>
    %15 = tpu.matmul %13, %14, %cst {dimension_numbers = #tpu.dot_dimension_numbers<[1], [0], [0], [1], [0, 0, 1, 1], [], []>} : vector<64x7xbf16>, vector<7x16xbf16>, vector<64x16xf32> -> vector<64x16xf32>
    %c0_3 = arith.constant 0 : index
    %c0_4 = arith.constant 0 : index
    %16 = vector.load %arg4[%c0_3, %c0_4] : memref<1x16xf32, #tpu.memory_space<vmem>>, vector<1x16xf32>
    %17 = vector.broadcast %16 : vector<1x16xf32> to vector<64x16xf32>
    %18 = arith.addf %15, %17 : vector<64x16xf32>
    %c0_5 = arith.constant 0 : index
    %c0_6 = arith.constant 0 : index
    %c0_7 = arith.constant 0 : index
    %19 = vector.load %arg6[%c0_5, %c0_6, %c0_7] : memref<1x64x16xf32, #tpu.memory_space<vmem>>, vector<1x64x16xf32>
    %20 = vector.shape_cast %19 : vector<1x64x16xf32> to vector<64x16xf32>
    %21 = vector.shape_cast %18 : vector<64x16xf32> to vector<1x64x16xf32>
    tpu.vector_store %arg6[%c0_5, %c0_6, %c0_7], %21 {strides = array<i32>} : memref<1x64x16xf32, #tpu.memory_space<vmem>>, vector<1x64x16xf32>,
    return
  }
  func.func @transform_0(%arg0: i32, %arg1: i32) -> (i32, i32, i32) {
    %c0_i32 = arith.constant 0 : i32
    %c0_i32_0 = arith.constant 0 : i32
    %c0_i32_1 = arith.constant 0 : i32
    return %arg0, %c0_i32, %c0_i32_0 : i32, i32, i32
  }
  func.func @transform_1(%arg0: i32, %arg1: i32) -> (i32, i32) {
    %c0_i32 = arith.constant 0 : i32
    %c0_i32_0 = arith.constant 0 : i32
    %c0_i32_1 = arith.constant 0 : i32
    return %c0_i32, %c0_i32_0 : i32, i32
  }
  func.func @transform_2(%arg0: i32, %arg1: i32) -> (i32, i32) {
    %c0_i32 = arith.constant 0 : i32
    %c0_i32_0 = arith.constant 0 : i32
    %c0_i32_1 = arith.constant 0 : i32
    return %c0_i32, %c0_i32_0 : i32, i32
  }
  func.func @transform_3(%arg0: i32, %arg1: i32) -> (i32, i32) {
    %c0_i32 = arith.constant 0 : i32
    %c0_i32_0 = arith.constant 0 : i32
    %c0_i32_1 = arith.constant 0 : i32
    return %c0_i32, %c0_i32_0 : i32, i32
  }
  func.func @transform_4(%arg0: i32, %arg1: i32) -> (i32, i32, i32) {
    %c0_i32 = arith.constant 0 : i32
    %c0_i32_0 = arith.constant 0 : i32
    return %arg0, %arg1, %c0_i32 : i32, i32, i32
  }
}

</mosaic_0001>

<llo_original>
// kernel: tpu_custom_call.1
$region0: #{tpu_custom_call.1}
  #allocation0 [shape = 'u32[]', space=smem, size = 0x4, offset = 0x4, fixed_abs, tag = 'smem constant byte address 0x4 - core index']
  #allocation1 [shape = 'u32[144,128]{1,0:T(1,128)}', space=vmem, size = 0x12000, scoped, tag = 'internal scratch']
  #allocation2 [shape = 'f32[1,1]{1,0:T(1,128)S(1)}', space=vmem, size = 0x200, scoped, tag = 'scoped memory for tpu_custom_call.1']
  %s0 = inlined_call_operand.vmem [shape: f32[2,70,1], index: 0, kind: input, shape index: {}]
  %s1 = inlined_call_operand.vmem [shape: bf16[7,16], index: 1, kind: input, shape index: {}]
  %s2 = inlined_call_operand.vmem [shape: f32[1,16], index: 2, kind: input, shape index: {}]
  %s3 = inlined_call_operand.<no memory space> [shape: f32[1,1], index: 3, kind: input, shape index: {}]
  %s4 = inlined_call_operand.vmem [shape: f32[2,64,16], index: 4, kind: output, shape index: {}]
  %s5 = sld [smem:[#allocation0]]
  $region49: #{tpu_custom_call.1} parent=0
    _
  %s7 = ssub.s32 1, %s5
  %s8 = scalar_select 0, %s7, %s5
  %v9 = vstv %s3
  %10 = vst [vmem:[#allocation2] sm:$0x1] %v9
  loop: start=0, step=1, limit=4
  $region2: #{tpu_custom_call.1} parent=0 // loop_pre_header
    _
  $region3: #{tpu_custom_call.1} parent=0 // loop_header
    %s12 = sphi 0, %s16
    %p13 = scmp.ge.s32.totalorder %s12, 4
    %s19 = sphi 0, %s31
    %s20 = sphi 0, %s27
    %s21 = sphi 0, %s19
    %s22 = sphi 0, %s20
    %s23 = sphi 0, %s21
    %s24 = sphi 0, %s22
    %s34 = sphi 0, %s36
    %s37 = sphi 0, %s34
    %s38 = sphi 0, %s37
    %s54 = sphi 0, %s38
    %s58 = sphi 0, %s58
    %s60 = sphi 0, %s58
    %s61 = sphi 0, %s60
    %s75 = sphi 0, %s61
    %s79 = sphi 0, %s79
    %s81 = sphi 0, %s79
    %s82 = sphi 0, %s81
    %s96 = sphi 0, %s82
    %s100 = sphi 0, %s100
    %s102 = sphi 0, %s100
    %s103 = sphi 0, %s102
    %s117 = sphi 0, %s103
    %s125 = sphi 0, %s127
    %s128 = sphi 0, %s125
    %s129 = sphi 0, %s128
    %s145 = sphi 0, %s129
  $region4: #{tpu_custom_call.1} parent=0 // loop_header_branch
    %15 = sbr.rel (%p13) target = $region8
  $region5: #{tpu_custom_call.1} parent=0 // loop_body
    %s17 = ssub.s32 %s12, 1
    %s18 = ssub.s32 %s12, 2
    %s25 = sadd.s32 1, %s20
    %p26 = scmp.ge.s32.totalorder %s25, 1
    %s27 = scalar_select %p26, 0, %s25
    %s28 = sadd.s32 1, %s19
    %s29 = scalar_select %p26, %s28, %s19
    %p30 = scmp.ge.s32.totalorder %s29, 2
    %s31 = scalar_select %p30, 0, %s29
    %s32 = ssub.s32 %s19, %s31
    %p33 = scmp.eq.s32.totalorder %s32, 0
    %s35 = sadd.s32 %s34, 1
    %s36 = scalar_select %p33, %s34, %s35
    %p39 = pneg %p33
    %p40 = scmp.eq.s32.totalorder %s12, 1
    %p41 = por %p39, %p40
    %p42 = scmp.ne.s32.totalorder %s34, %s37
    %p43 = scmp.eq.s32.totalorder %s12, 0
    %p44 = por %p42, %p43
    %p45 = scmp.ne.s32.totalorder %s34, %s37
    %p46 = scmp.eq.s32.totalorder %s17, 1
    %p47 = por %p45, %p46
    %p48 = scmp.ne.s32.totalorder %s37, %s38
    %p49 = scmp.eq.s32.totalorder %s17, 0
    %p50 = por %p48, %p49
    %p51 = scmp.ne.s32.totalorder %s37, %s38
    %p52 = scmp.eq.s32.totalorder %s18, 1
    %p53 = por %p51, %p52
    %p55 = scmp.ne.s32.totalorder %s38, %s54
    %p56 = scmp.eq.s32.totalorder %s18, 0
    %p57 = por %p55, %p56
    %s59 = sadd.s32 %s58, 1
    %p62 = scmp.eq.s32.totalorder %s12, 1
    %p63 = scmp.ne.s32.totalorder %s58, %s60
    %p64 = scmp.eq.s32.totalorder %s12, 0
    %p65 = por %p63, %p64
    %p66 = scmp.ne.s32.totalorder %s58, %s60
    %p67 = scmp.eq.s32.totalorder %s17, 1
    %p68 = por %p66, %p67
    %p69 = scmp.ne.s32.totalorder %s60, %s61
    %p70 = scmp.eq.s32.totalorder %s17, 0
    %p71 = por %p69, %p70
    %p72 = scmp.ne.s32.totalorder %s60, %s61
    %p73 = scmp.eq.s32.totalorder %s18, 1
    %p74 = por %p72, %p73
    %p76 = scmp.ne.s32.totalorder %s61, %s75
    %p77 = scmp.eq.s32.totalorder %s18, 0
    %p78 = por %p76, %p77
    %s80 = sadd.s32 %s79, 1
    %p83 = scmp.eq.s32.totalorder %s12, 1
    %p84 = scmp.ne.s32.totalorder %s79, %s81
    %p85 = scmp.eq.s32.totalorder %s12, 0
    %p86 = por %p84, %p85
    %p87 = scmp.ne.s32.totalorder %s79, %s81
    %p88 = scmp.eq.s32.totalorder %s17, 1
    %p89 = por %p87, %p88
    %p90 = scmp.ne.s32.totalorder %s81, %s82
    %p91 = scmp.eq.s32.totalorder %s17, 0
    %p92 = por %p90, %p91
    %p93 = scmp.ne.s32.totalorder %s81, %s82
    %p94 = scmp.eq.s32.totalorder %s18, 1
    %p95 = por %p93, %p94
    %p97 = scmp.ne.s32.totalorder %s82, %s96
    %p98 = scmp.eq.s32.totalorder %s18, 0
    %p99 = por %p97, %p98
    %s101 = sadd.s32 %s100, 1
    %p104 = scmp.eq.s32.totalorder %s12, 1
    %p105 = scmp.ne.s32.totalorder %s100, %s102
    %p106 = scmp.eq.s32.totalorder %s12, 0
    %p107 = por %p105, %p106
    %p108 = scmp.ne.s32.totalorder %s100, %s102
    %p109 = scmp.eq.s32.totalorder %s17, 1
    %p110 = por %p108, %p109
    %p111 = scmp.ne.s32.totalorder %s102, %s103
    %p112 = scmp.eq.s32.totalorder %s17, 0
    %p113 = por %p111, %p112
    %p114 = scmp.ne.s32.totalorder %s102, %s103
    %p115 = scmp.eq.s32.totalorder %s18, 1
    %p116 = por %p114, %p115
    %p118 = scmp.ne.s32.totalorder %s103, %s117
    %p119 = scmp.eq.s32.totalorder %s18, 0
    %p120 = por %p118, %p119
    %s121 = ssub.s32 %s19, %s31
    %s122 = ssub.s32 %s20, %s27
    %s123 = sor.u32 %s121, %s122
    %p124 = scmp.eq.s32.totalorder %s123, 0
    %s126 = sadd.s32 %s125, 1
    %s127 = scalar_select %p124, %s125, %s126
    %p130 = pneg %p124
    %p131 = scmp.eq.s32.totalorder %s12, 1
    %p132 = por %p130, %p131
    %p133 = scmp.ne.s32.totalorder %s125, %s128
    %p134 = scmp.eq.s32.totalorder %s12, 0
    %p135 = por %p133, %p134
    %p136 = scmp.ne.s32.totalorder %s125, %s128
    %p137 = scmp.eq.s32.totalorder %s17, 1
    %p138 = por %p136, %p137
    %p139 = scmp.ne.s32.totalorder %s128, %s129
    %p140 = scmp.eq.s32.totalorder %s17, 0
    %p141 = por %p139, %p140
    %p142 = scmp.ne.s32.totalorder %s128, %s129
    %p143 = scmp.eq.s32.totalorder %s18, 1
    %p144 = por %p142, %p143
    %p146 = scmp.ne.s32.totalorder %s129, %s145
    %p147 = scmp.eq.s32.totalorder %s18, 0
    %p148 = por %p146, %p147
    %p149 = scmp.le.s32.totalorder 1, %s12
    %p150 = scmp.lt.s32.totalorder %s12, 3
    %p151 = pnand %p149, %p150
    %p152 = pneg %p151
    // Predicated region
    $region9: #{tpu_custom_call.1} parent=5 // pred_check
      _
    $region10: #{tpu_custom_call.1} parent=5 // pred_check_branch
      %154 = sbr.rel (%p151) target = $region12
    $region11: #{tpu_custom_call.1} parent=5 // pred_region
      %s155 = ssub.s32 %s12, 1
      // Predicated region
      $region13: #{tpu_custom_call.1} parent=11 // pred_check
        %p156 = pneg %p71
      $region14: #{tpu_custom_call.1} parent=11 // pred_check_branch
        %158 = sbr.rel (%p156) target = $region16
      $region15: #{tpu_custom_call.1} parent=11 // pred_region
        _
      $region16: #{tpu_custom_call.1} parent=11 // pred_fallthru
        _
      // Predicated region
      $region17: #{tpu_custom_call.1} parent=11 // pred_check
        %p159 = pneg %p92
      $region18: #{tpu_custom_call.1} parent=11 // pred_check_branch
        %161 = sbr.rel (%p159) target = $region20
      $region19: #{tpu_custom_call.1} parent=11 // pred_region
        _
      $region20: #{tpu_custom_call.1} parent=11 // pred_fallthru
        _
      // Predicated region
      $region21: #{tpu_custom_call.1} parent=11 // pred_check
        %p162 = pneg %p113
      $region22: #{tpu_custom_call.1} parent=11 // pred_check_branch
        %164 = sbr.rel (%p162) target = $region24
      $region23: #{tpu_custom_call.1} parent=11 // pred_region
        _
      $region24: #{tpu_custom_call.1} parent=11 // pred_fallthru
        _
    $region12: #{tpu_custom_call.1} parent=5 // pred_fallthru
      _
    %p165 = scmp.lt.s32.totalorder %s12, 2
    // Predicated region
    $region25: #{tpu_custom_call.1} parent=5 // pred_check
      %p166 = pneg %p165
    $region26: #{tpu_custom_call.1} parent=5 // pred_check_branch
      %168 = sbr.rel (%p166) target = $region28
    $region27: #{tpu_custom_call.1} parent=5 // pred_region
      // Predicated region
      $region29: #{tpu_custom_call.1} parent=27 // pred_check
        %p169 = pneg %p44
      $region30: #{tpu_custom_call.1} parent=27 // pred_check_branch
        %171 = sbr.rel (%p169) target = $region32
      $region31: #{tpu_custom_call.1} parent=27 // pred_region
        %p172 = scmp.lt.s32.totalorder %s19, 1
        %s173 = scalar_select %p172, %s19, 1
        %s174 = smul.addr %s173, 9
        %s175 = smul.addr %s174, 8
        %s176 = scalar_lea.vmem %s0, %s175
      $region32: #{tpu_custom_call.1} parent=27 // pred_fallthru
        _
    $region28: #{tpu_custom_call.1} parent=5 // pred_fallthru
      _
    %p177 = scmp.le.s32.totalorder 1, %s12
    %p178 = scmp.lt.s32.totalorder %s12, 3
    %p179 = pnand %p177, %p178
    %p180 = pneg %p179
    // Predicated region
    $region33: #{tpu_custom_call.1} parent=5 // pred_check
      _
    $region34: #{tpu_custom_call.1} parent=5 // pred_check_branch
      %182 = sbr.rel (%p179) target = $region36
    $region35: #{tpu_custom_call.1} parent=5 // pred_region
      %s183 = ssub.s32 %s12, 1
      %p184 = scmp.lt.s32.totalorder %s21, 1
      %s185 = scalar_select %p184, %s21, 1
      %s186 = smul.addr %s185, 9
      %s187 = smul.addr %s186, 8
      %s188 = scalar_lea.vmem %s0, %s187
      %p189 = pneg %p50
      %p190 = pneg %p47
      %p191 = pneg %p71
      %p192 = pneg %p68
      %p193 = pneg %p92
      %p194 = pneg %p89
      %p195 = pneg %p113
      %p196 = pneg %p110
      %p197 = pneg %p141
      %p198 = pneg %p138
      %s199 = smul.u32 8, %s22
      %p200 = scmp.lt.s32.totalorder %s21, 1
      %s201 = scalar_select %p200, %s21, 1
      %p202 = scmp.lt.s32.totalorder %s199, 7
      %s203 = scalar_select %p202, %s199, 7
      %s204 = smul.addr %s201, 8
      %s205 = sadd.s32 %s203, %s204
      %s206 = smul.addr %s205, 8
      %s207 = scalar_lea.vmem %s4, %s206
      %p208 = scmp.lt.s32.totalorder %s21, 1
      %s209 = scalar_select %p208, %s21, 1
      %s210 = smul.addr %s209, 9
      %s211 = smul.addr %s210, 8
      %s212 = scalar_lea.vmem %s0, %s211
      %s213 = smul.u32 8, %s22
      %p214 = scmp.lt.s32.totalorder %s21, 1
      %s215 = scalar_select %p214, %s21, 1
      %p216 = scmp.lt.s32.totalorder %s213, 7
      %s217 = scalar_select %p216, %s213, 7
      %s218 = smul.addr %s215, 8
      %s219 = sadd.s32 %s217, %s218
      %s220 = smul.addr %s219, 8
      %s221 = scalar_lea.vmem %s4, %s220
      %s222 = smul.u32 8, %s22
      %s224 = smul.u32 %s22, 64
      %s225 = scalar_lea.vmem %s212, %s224
      %v226 = vld [vmem:[%s225] sm:$0xff]
      %v227 = vld [vmem:[%s225 + $0x8] sm:$0xff]
      %v228 = vld [vmem:[%s225 + $0x10] sm:$0xff]
      %v229 = vld [vmem:[%s225 + $0x18] sm:$0xff]
      %v230 = vld [vmem:[%s225 + $0x20] sm:$0xff]
      %v231 = vld [vmem:[%s225 + $0x28] sm:$0xff]
      %v232 = vld [vmem:[%s225 + $0x30] sm:$0xff]
      %v233 = vld [vmem:[%s225 + $0x38] sm:$0xff]
      %v234 = vld [vmem:[%s225 + $0x40] sm:$0x3f]
      %v235 = vpack.c.bf16 %v227, %v226
      %v236 = vpack.c.bf16 %v229, %v228
      %v237 = vpack.c.bf16 %v231, %v230
      %v238 = vpack.c.bf16 %v233, %v232
      %v239 = vpack.c.bf16 %v234, %v234
      %vm240 = vsmask.f32 7424
      %v242 = vshrl.u32 %v235, 16
      %v244 = vshll.u32 %v235, 16
      %v246 = vrot.slane %v244, 1
      %v247 = vor.u32 %v242, %v246
      %v249 = vshll.u32 %v236, 16
      %v251 = vrot.slane %v249, 1
      %v252 = vsel %vm240, %v247, %v251
      %v253 = vshrl.u32 %v236, 16
      %v255 = vor.u32 %v253, %v251
      %v257 = vshll.u32 %v237, 16
      %v259 = vrot.slane %v257, 1
      %v260 = vsel %vm240, %v255, %v259
      %v261 = vshrl.u32 %v237, 16
      %v263 = vor.u32 %v261, %v259
      %v265 = vshll.u32 %v238, 16
      %v267 = vrot.slane %v265, 1
      %v268 = vsel %vm240, %v263, %v267
      %v269 = vshrl.u32 %v238, 16
      %v271 = vor.u32 %v269, %v267
      %v273 = vshll.u32 %v239, 16
      %v275 = vrot.slane %v273, 1
      %v276 = vsel %vm240, %v271, %v275
      %277 = vrot.lane.b32.xlu0 %v252, 1
      %v278 = vpop.permute.xlu0 %277
      %279 = vrot.lane.b32.xlu0 %v260, 1
      %v280 = vpop.permute.xlu0 %279
      %281 = vrot.lane.b32.xlu0 %v268, 1
      %v282 = vpop.permute.xlu0 %281
      %283 = vrot.lane.b32.xlu0 %v276, 1
      %v284 = vpop.permute.xlu0 %283
      %vm290 = vcmask 1046528
      %v291 = vrot.slane %v235, 1
      %v292 = vrot.slane %v236, 1
      %v293 = vsel %vm290, %v291, %v292
      %v294 = vrot.slane %v237, 1
      %v295 = vsel %vm290, %v292, %v294
      %v296 = vrot.slane %v238, 1
      %v297 = vsel %vm290, %v294, %v296
      %v298 = vrot.slane %v239, 1
      %v299 = vsel %vm290, %v296, %v298
      %300 = vrot.lane.b32.xlu0 %v293, 2
      %v301 = vpop.permute.xlu0 %300
      %302 = vrot.lane.b32.xlu0 %v295, 2
      %v303 = vpop.permute.xlu0 %302
      %304 = vrot.lane.b32.xlu0 %v297, 2
      %v305 = vpop.permute.xlu0 %304
      %306 = vrot.lane.b32.xlu0 %v299, 2
      %v307 = vpop.permute.xlu0 %306
      %vm308 = vsmask.f32 6400
      %v309 = vrot.slane %v242, 1
      %v310 = vrot.slane %v244, 2
      %v311 = vor.u32 %v309, %v310
      %v312 = vrot.slane %v253, 1
      %v313 = vrot.slane %v249, 2
      %v314 = vor.u32 %v312, %v313
      %v315 = vsel %vm308, %v311, %v314
      %v316 = vrot.slane %v261, 1
      %v317 = vrot.slane %v257, 2
      %v318 = vor.u32 %v316, %v317
      %v319 = vsel %vm308, %v314, %v318
      %v320 = vrot.slane %v269, 1
      %v321 = vrot.slane %v265, 2
      %v322 = vor.u32 %v320, %v321
      %v323 = vsel %vm308, %v318, %v322
      %v324 = vshrl.u32 %v239, 16
      %v326 = vrot.slane %v324, 1
      %v327 = vrot.slane %v273, 2
      %v328 = vor.u32 %v326, %v327
      %v329 = vsel %vm308, %v322, %v328
      %330 = vrot.lane.b32.xlu0 %v315, 3
      %v331 = vpop.permute.xlu0 %330
      %332 = vrot.lane.b32.xlu0 %v319, 3
      %v333 = vpop.permute.xlu0 %332
      %334 = vrot.lane.b32.xlu0 %v323, 3
      %v335 = vpop.permute.xlu0 %334
      %336 = vrot.lane.b32.xlu0 %v329, 3
      %v337 = vpop.permute.xlu0 %336
      %vm338 = vcmask 1045504
      %v339 = vrot.slane %v235, 2
      %v340 = vrot.slane %v236, 2
      %v341 = vsel %vm338, %v339, %v340
      %v342 = vrot.slane %v237, 2
      %v343 = vsel %vm338, %v340, %v342
      %v344 = vrot.slane %v238, 2
      %v345 = vsel %vm338, %v342, %v344
      %v346 = vrot.slane %v239, 2
      %v347 = vsel %vm338, %v344, %v346
      %348 = vrot.lane.b32.xlu0 %v341, 4
      %v349 = vpop.permute.xlu0 %348
      %350 = vrot.lane.b32.xlu0 %v343, 4
      %v351 = vpop.permute.xlu0 %350
      %352 = vrot.lane.b32.xlu0 %v345, 4
      %v353 = vpop.permute.xlu0 %352
      %354 = vrot.lane.b32.xlu0 %v347, 4
      %v355 = vpop.permute.xlu0 %354
      %vm356 = vsmask.f32 5376
      %v357 = vrot.slane %v242, 2
      %v358 = vrot.slane %v244, 3
      %v359 = vor.u32 %v357, %v358
      %v360 = vrot.slane %v253, 2
      %v361 = vrot.slane %v249, 3
      %v362 = vor.u32 %v360, %v361
      %v363 = vsel %vm356, %v359, %v362
      %v364 = vrot.slane %v261, 2
      %v365 = vrot.slane %v257, 3
      %v366 = vor.u32 %v364, %v365
      %v367 = vsel %vm356, %v362, %v366
      %v368 = vrot.slane %v269, 2
      %v369 = vrot.slane %v265, 3
      %v370 = vor.u32 %v368, %v369
      %v371 = vsel %vm356, %v366, %v370
      %v372 = vrot.slane %v324, 2
      %v373 = vrot.slane %v273, 3
      %v374 = vor.u32 %v372, %v373
      %v375 = vsel %vm356, %v370, %v374
      %376 = vrot.lane.b32.xlu0 %v363, 5
      %v377 = vpop.permute.xlu0 %376
      %378 = vrot.lane.b32.xlu0 %v367, 5
      %v379 = vpop.permute.xlu0 %378
      %380 = vrot.lane.b32.xlu0 %v371, 5
      %v381 = vpop.permute.xlu0 %380
      %382 = vrot.lane.b32.xlu0 %v375, 5
      %v383 = vpop.permute.xlu0 %382
      %vm384 = vcmask 1044480
      %v385 = vrot.slane %v235, 3
      %v386 = vrot.slane %v236, 3
      %v387 = vsel %vm384, %v385, %v386
      %v388 = vrot.slane %v237, 3
      %v389 = vsel %vm384, %v386, %v388
      %v390 = vrot.slane %v238, 3
      %v391 = vsel %vm384, %v388, %v390
      %v392 = vrot.slane %v239, 3
      %v393 = vsel %vm384, %v390, %v392
      %394 = vrot.lane.b32.xlu0 %v387, 6
      %v395 = vpop.permute.xlu0 %394
      %396 = vrot.lane.b32.xlu0 %v389, 6
      %v397 = vpop.permute.xlu0 %396
      %398 = vrot.lane.b32.xlu0 %v391, 6
      %v399 = vpop.permute.xlu0 %398
      %400 = vrot.lane.b32.xlu0 %v393, 6
      %v401 = vpop.permute.xlu0 %400
      %vm402 = vcmask 7168
      %v404 = vsel %vm402, %v235, %v278
      %v406 = vsel %vm402, %v236, %v280
      %v408 = vsel %vm402, %v237, %v282
      %v410 = vsel %vm402, %v238, %v284
      %vm411 = vcmask 15360
      %v413 = vsel %vm411, %v404, %v301
      %v415 = vsel %vm411, %v406, %v303
      %v417 = vsel %vm411, %v408, %v305
      %v419 = vsel %vm411, %v410, %v307
      %vm420 = vcmask 23552
      %v422 = vsel %vm420, %v413, %v331
      %v424 = vsel %vm420, %v415, %v333
      %v426 = vsel %vm420, %v417, %v335
      %v428 = vsel %vm420, %v419, %v337
      %vm429 = vcmask 31744
      %v431 = vsel %vm429, %v422, %v349
      %v433 = vsel %vm429, %v424, %v351
      %v435 = vsel %vm429, %v426, %v353
      %v437 = vsel %vm429, %v428, %v355
      %vm438 = vcmask 39936
      %v440 = vsel %vm438, %v431, %v377
      %v442 = vsel %vm438, %v433, %v379
      %v444 = vsel %vm438, %v435, %v381
      %v446 = vsel %vm438, %v437, %v383
      %vm447 = vcmask 48128
      %v449 = vsel %vm447, %v440, %v395
      %v451 = vsel %vm447, %v442, %v397
      %v453 = vsel %vm447, %v444, %v399
      %v455 = vsel %vm447, %v446, %v401
      %v456 = vld [vmem:[%s1] sm:$0xf]
      %v457 = vld [vmem:[%s2] sm:$0x1]
      %v459 = vlaneseq
      %v460 = vshrl.u32 %v459, 7
      %v461 = vsub.s32 0, %v460
      %v462 = vrot.slane %v457, %v461
      %vm464 = vcmask 56320
      %v465 = vsel %vm464, %v449, 0
      %v467 = vsel %vm464, %v451, 0
      %v469 = vsel %vm464, %v453, 0
      %v471 = vsel %vm464, %v455, 0
      %vm473 = vcmask 1042432
      %vm474 = vcmask 1043456
      %v475 = vsel %vm473, 4294967295, 65535
      %v476 = vsel %vm474, %v475, 0
      %v478 = vand.u32 %v456, %v476
      %480 = vmatprep.subr.bf16.mxu0 0
      %481 = vmatpush1.bf16.msra.mxu0 %v478
      %482 = vmatprep.subr.bf16.mxu0 0
      %483 = vmatpush1.bf16.msra.mxu0 0
      %484 = vmatprep.subr.bf16.mxu0 0
      %485 = vmatpush1.bf16.msra.mxu0 0
      %486 = vmatprep.subr.bf16.mxu0 0
      %487 = vmatpush1.bf16.msra.mxu0 0
      %488 = vmatprep.subr.bf16.mxu0 0
      %489 = vmatpush1.bf16.msra.mxu0 0
      %490 = vmatprep.subr.bf16.mxu0 0
      %491 = vmatpush1.bf16.msra.mxu0 0
      %492 = vmatprep.subr.bf16.mxu0 0
      %493 = vmatpush1.bf16.msra.mxu0 0
      %494 = vmatprep.subr.bf16.mxu0 0
      %495 = vmatpush1.bf16.msra.mxu0 0
      %496 = vmatprep.subr.bf16.mxu0 0
      %497 = vmatpush1.bf16.msra.mxu0 0
      %498 = vmatprep.subr.bf16.mxu0 0
      %499 = vmatpush1.bf16.msra.mxu0 0
      %500 = vmatprep.subr.bf16.mxu0 0
      %501 = vmatpush1.bf16.msra.mxu0 0
      %502 = vmatprep.subr.bf16.mxu0 0
      %503 = vmatpush1.bf16.msra.mxu0 0
      %504 = vmatprep.subr.bf16.mxu0 0
      %505 = vmatpush1.bf16.msra.mxu0 0
      %506 = vmatprep.subr.bf16.mxu0 0
      %507 = vmatpush1.bf16.msra.mxu0 0
      %508 = vmatprep.subr.bf16.mxu0 0
      %509 = vmatpush1.bf16.msra.mxu0 0
      %510 = vmatprep.subr.bf16.mxu0 0
      %511 = vmatpush1.bf16.msra.mxu0 0
      %512 = vmatprep.mubr.bf16.mxu0 0
      %513 = vmatmul.mubr.bf16.gmra.mrb[0].mxu0 %v465
      %v514 = vpop.f32.mrb[0].mxu0
      %v515 = vadd.f32 %v462, %v514
      %v516 = vpop.f32.mrb[0].mxu0
      %v517 = vpop.f32.mrb[0].mxu0
      %v518 = vadd.f32 %v462, %v517
      %v519 = vpop.f32.mrb[0].mxu0
      %520 = vmatprep.mubr.bf16.mxu0 0
      %521 = vmatmul.mubr.bf16.gmra.mrb[0].mxu0 %v467
      %v522 = vpop.f32.mrb[0].mxu0
      %v523 = vadd.f32 %v462, %v522
      %v524 = vpop.f32.mrb[0].mxu0
      %v525 = vpop.f32.mrb[0].mxu0
      %v526 = vadd.f32 %v462, %v525
      %v527 = vpop.f32.mrb[0].mxu0
      %528 = vmatprep.mubr.bf16.mxu0 0
      %529 = vmatmul.mubr.bf16.gmra.mrb[0].mxu0 %v469
      %v530 = vpop.f32.mrb[0].mxu0
      %v531 = vadd.f32 %v462, %v530
      %v532 = vpop.f32.mrb[0].mxu0
      %v533 = vpop.f32.mrb[0].mxu0
      %v534 = vadd.f32 %v462, %v533
      %v535 = vpop.f32.mrb[0].mxu0
      %536 = vmatprep.mubr.bf16.mxu0 0
      %537 = vmatmul.mubr.bf16.gmra.mrb[0].mxu0 %v471
      %v538 = vpop.f32.mrb[0].mxu0
      %v539 = vadd.f32 %v462, %v538
      %v540 = vpop.f32.mrb[0].mxu0
      %v541 = vpop.f32.mrb[0].mxu0
      %v542 = vadd.f32 %v462, %v541
      %v543 = vpop.f32.mrb[0].mxu0
      %544 = vdwg.mxu0
      %vm545 = vcmask 130048
      %546 = vst.msk [vmem:[%s221] sm:$0xff] %vm545, %v515
      %547 = vst.msk [vmem:[%s221 + $0x8] sm:$0xff] %vm545, %v518
      %548 = vst.msk [vmem:[%s221 + $0x10] sm:$0xff] %vm545, %v523
      %549 = vst.msk [vmem:[%s221 + $0x18] sm:$0xff] %vm545, %v526
      %550 = vst.msk [vmem:[%s221 + $0x20] sm:$0xff] %vm545, %v531
      %551 = vst.msk [vmem:[%s221 + $0x28] sm:$0xff] %vm545, %v534
      %552 = vst.msk [vmem:[%s221 + $0x30] sm:$0xff] %vm545, %v539
      %553 = vst.msk [vmem:[%s221 + $0x38] sm:$0xff] %vm545, %v542
      %s554 = smul.u32 8, %s22
      %p555 = scmp.lt.s32.totalorder %s21, 1
      %s556 = scalar_select %p555, %s21, 1
      %p557 = scmp.lt.s32.totalorder %s554, 7
      %s558 = scalar_select %p557, %s554, 7
      %s559 = smul.addr %s556, 8
      %s560 = sadd.s32 %s558, %s559
      %s561 = smul.addr %s560, 8
      %s562 = scalar_lea.vmem %s4, %s561
      // Predicated region
      $region37: #{tpu_custom_call.1} parent=35 // pred_check
        %p563 = pneg %p138
      $region38: #{tpu_custom_call.1} parent=35 // pred_check_branch
        %565 = sbr.rel (%p563) target = $region40
      $region39: #{tpu_custom_call.1} parent=35 // pred_region
        %s566 = smul.u32 8, %s22
      $region40: #{tpu_custom_call.1} parent=35 // pred_fallthru
        _
    $region36: #{tpu_custom_call.1} parent=5 // pred_fallthru
      _
    %p567 = scmp.le.s32.totalorder 2, %s12
    // Predicated region
    $region41: #{tpu_custom_call.1} parent=5 // pred_check
      %p568 = pneg %p567
    $region42: #{tpu_custom_call.1} parent=5 // pred_check_branch
      %570 = sbr.rel (%p568) target = $region44
    $region43: #{tpu_custom_call.1} parent=5 // pred_region
      %s571 = ssub.s32 %s12, 2
      // Predicated region
      $region45: #{tpu_custom_call.1} parent=43 // pred_check
        %p572 = pneg %p144
      $region46: #{tpu_custom_call.1} parent=43 // pred_check_branch
        %574 = sbr.rel (%p572) target = $region48
      $region47: #{tpu_custom_call.1} parent=43 // pred_region
        %s575 = smul.u32 8, %s24
        %p576 = scmp.lt.s32.totalorder %s23, 1
        %s577 = scalar_select %p576, %s23, 1
        %p578 = scmp.lt.s32.totalorder %s575, 7
        %s579 = scalar_select %p578, %s575, 7
        %s580 = smul.addr %s577, 8
        %s581 = sadd.s32 %s579, %s580
        %s582 = smul.addr %s581, 8
        %s583 = scalar_lea.vmem %s4, %s582
      $region48: #{tpu_custom_call.1} parent=43 // pred_fallthru
        _
    $region44: #{tpu_custom_call.1} parent=5 // pred_fallthru
      _
  $region6: #{tpu_custom_call.1} parent=0 // loop_footer
    %s16 = sadd.s32 1, %s12
  $region7: #{tpu_custom_call.1} parent=0 // loop_footer_branch
    %11 = sbr.rel target = $region3
  $region8: #{tpu_custom_call.1} parent=0 // loop_exit
    _

</llo_original>
